<compile_context>
chip_gen: v7x
topology: tpu7x:2x2x1
jax: 0.10.0
libtpu: 0.0.40
codegen_flags: <defaults>
</compile_context>

<pallas_src>
import functools

import jax
import jax.numpy as jnp
from jax.experimental import pallas as pl
from jax.experimental.pallas import tpu as pltpu


# ---------------------------------------------------------------------------
# Fused kernel: 1x1 conv+BN+ReLU -> depthwise 3x3 conv+BN+ReLU.
# Operates on nb whole images in folded layout (rows = nb*H, lanes = W*Cout).
# ---------------------------------------------------------------------------
def _fused_kernel(x_ref, w1_ref, b1_ref, dw_ref, b2_ref, sep_ref, *rest,
                  nb, H, hout, stride, cout, return_conv):
    if return_conv:
        conv_ref, zs_ref = rest
    else:
        (zs_ref,) = rest

    WC = w1_ref.shape[1]          # lane width of the 1x1 output (= W*Cout)
    slab = H + 2                  # rows per image in the padded scratch

    # ---- 1x1 conv + BN + ReLU for all nb images at once (MXU) -------------
    z = jnp.dot(x_ref[...], w1_ref[...], preferred_element_type=jnp.float32)
    z = jnp.maximum(z + b1_ref[...], 0.0)             # (nb*H, WC)

    if return_conv:
        conv_ref[...] = z.astype(conv_ref.dtype)

    # ---- depthwise 3x3 + BN + ReLU (VPU + XLU) -----------------------------
    # Hoisted lane masks / roll shifts (not rebuilt per tap).
    lane = jax.lax.broadcasted_iota(jnp.int32, (hout, WC), 1)
    left_ok = lane >= cout
    if stride == 1:
        shift_l, shift_r = cout, WC - cout
        right_ok = lane < WC - cout
    else:
        woc = WC // 2             # even/odd-w phase halves (W even)
        shift_l, shift_r = woc + cout, woc
        right_ok = None

    dwv = dw_ref[...]             # (9, WC) folded per-tap weights
    b2v = b2_ref[...]             # (1, WC)
    zero_row = jnp.zeros((1, WC), jnp.float32)

    for n in range(nb):           # static unroll; nb is small
        base = n * slab
        # One zero pad row above / below the image == depthwise H zero pad.
        zs_ref[pl.ds(base, 1), :] = zero_row
        zs_ref[pl.ds(base + 1, H), :] = z[n * H:(n + 1) * H, :]
        zs_ref[pl.ds(base + 1 + H, 1), :] = zero_row

        acc = None
        for kh in range(3):
            if stride == 1:
                zk = zs_ref[pl.ds(base + kh, hout), :]
            else:  # strided sublane read replaces the old rsel 0/1 matmul
                zk = zs_ref[pl.ds(base + kh, hout, stride=stride), :]

            # W-direction taps: lane rolls / phase slices (exact, no matmul).
            t_l = jnp.where(left_ok,
                            pltpu.roll(zk, shift=shift_l, axis=1), 0.0)
            t_c = zk
            if stride == 1:
                t_r = jnp.where(right_ok,
                                pltpu.roll(zk, shift=shift_r, axis=1), 0.0)
            else:
                # odd-w phase block j; out-of-band lanes carry zero weights
                t_r = pltpu.roll(zk, shift=shift_r, axis=1)

            for kw, tap in enumerate((t_l, t_c, t_r)):
                term = tap * dwv[kh * 3 + kw:kh * 3 + kw + 1, :]
                acc = term if acc is None else acc + term

        sep_ref[pl.ds(n * hout, hout), :] = jnp.maximum(
            acc + b2v, 0.0).astype(sep_ref.dtype)


# ---------------------------------------------------------------------------
# Images folded per grid step: generation-aware VMEM budget + MXU M target.
# ---------------------------------------------------------------------------
def _pick_images_per_step(N, H, hout, WCin, WC, return_both, target_rows=256):
    try:
        cap = getattr(pltpu.get_tpu_info(), "vmem_capacity_bytes", None)
    except Exception:  # pragma: no cover - off-TPU tracing
        cap = None
    cap = cap or 128 * 1024 * 1024
    budget = max(4 * 1024 * 1024, cap // 16)   # ~4 MiB v7x, ~8 MiB v5e/v6e
    # double-buffered grid-invariant operands + per-image blocks & scratch
    fixed = 4 * (2 * WCin * WC + 2 * 11 * WC)
    per_img = 4 * (2 * H * WCin + 2 * hout * WC + (H + 2) * WC)
    if return_both:
        per_img += 4 * 2 * H * WC
    nb = 1
    for cand in range(1, N + 1):
        if N % cand:
            continue
        if fixed + cand * per_img > budget:
            break
        nb = cand
        if cand * H >= target_rows:
            break
    return nb


# ---------------------------------------------------------------------------
# ConvSepBlock forward (NHWC)
# ---------------------------------------------------------------------------
def conv_sep_block(x_nhwc, params, stride=1, return_both=False):
    assert stride in (1, 2), "TODO(synk): general strides not implemented"
    N, H, W, Cin = x_nhwc.shape
    Cout = params["w1"].shape[1]
    hout = (H - 1) // stride + 1
    Wout = (W - 1) // stride + 1
    if stride == 2:
        assert W % 2 == 0, "stride=2 path requires even W"
    WCin, WC, WoC = W * Cin, W * Cout, Wout * Cout
    # Folded block-diagonal layout gate (review #7).
    assert WCin <= 128 and WC <= 256, (
        "TODO(synk): channels-last fallback for large W*C not implemented")

    # ---- fold BN (inference) into weights; build lane-folded params --------
    w1s = params["w1"] * params["scale1"][None, :]               # (Cin, Cout)
    w1b = jnp.kron(jnp.eye(W, dtype=w1s.dtype), w1s)             # (WCin, WC)
    b1 = jnp.tile(params["shift1"], W).reshape(1, WC)
    dvec = (params["dw"] * params["scale2"][None, None, :]).reshape(9, Cout)
    if stride == 1:
        dwf = jnp.tile(dvec, (1, W))                             # (9, WC)
        b2 = jnp.tile(params["shift2"], W).reshape(1, WC)
    else:
        # Permute 1x1 output columns into even/odd-w phase-major lane order so
        # the strided W taps in the kernel are plain lane rolls (exact).
        perm = jnp.concatenate([jnp.arange(0, W, 2), jnp.arange(1, W, 2)])
        w1b = w1b.reshape(WCin, W, Cout)[:, perm, :].reshape(WCin, WC)
        pad = WC - WoC
        dwf = jnp.concatenate(
            [jnp.tile(dvec, (1, Wout)), jnp.zeros((9, pad), dvec.dtype)], 1)
        b2 = jnp.concatenate(
            [jnp.tile(params["shift2"], Wout),
             jnp.zeros((pad,), w1s.dtype)]).reshape(1, WC)

    xf = x_nhwc.reshape(N * H, WCin)                             # folded input

    nb = _pick_images_per_step(N, H, hout, WCin, WC, return_both)
    n_steps = N // nb
    rows_in, rows_out = nb * H, nb * hout

    in_specs = [
        pl.BlockSpec((rows_in, WCin), lambda i: (i, 0)),
        pl.BlockSpec((WCin, WC), lambda i: (0, 0)),
        pl.BlockSpec((1, WC), lambda i: (0, 0)),
        pl.BlockSpec((9, WC), lambda i: (0, 0)),
        pl.BlockSpec((1, WC), lambda i: (0, 0)),
    ]
    out_shape = [jax.ShapeDtypeStruct((N * hout, WC), jnp.float32)]
    out_specs = [pl.BlockSpec((rows_out, WC), lambda i: (i, 0))]
    if return_both:
        out_shape.append(jax.ShapeDtypeStruct((N * H, WC), jnp.float32))
        out_specs.append(pl.BlockSpec((rows_in, WC), lambda i: (i, 0)))

    kernel = functools.partial(
        _fused_kernel, nb=nb, H=H, hout=hout, stride=stride, cout=Cout,
        return_conv=return_both)

    outs = pl.pallas_call(
        kernel,
        out_shape=tuple(out_shape) if return_both else out_shape[0],
        grid_spec=pltpu.PrefetchScalarGridSpec(
            num_scalar_prefetch=0,
            grid=(n_steps,),
            in_specs=in_specs,
            out_specs=tuple(out_specs) if return_both else out_specs[0],
            scratch_shapes=[pltpu.VMEM((nb * (H + 2), WC), jnp.float32)],
        ),
        compiler_params=pltpu.CompilerParams(
            dimension_semantics=("parallel",),
            vmem_limit_bytes=32 * 1024 * 1024),
    )(xf, w1b, b1, dwf, b2)

    sep_f = outs[0] if return_both else outs
    if stride == 1:
        sep = sep_f.reshape(N, hout, W, Cout)
    else:
        sep = sep_f[:, :WoC].reshape(N, hout, Wout, Cout)
    if not return_both:
        return sep
    conv_f = outs[1]
    if stride == 1:
        conv = conv_f.reshape(N, H, W, Cout)
    else:  # undo the even/odd-w phase permutation of the conv lanes
        conv = conv_f.reshape(N, H, 2, W // 2, Cout).transpose(
            0, 1, 3, 2, 4).reshape(N, H, W, Cout)
    return conv, sep


conv_sep_block = jax.jit(conv_sep_block,
                         static_argnames=("stride", "return_both"))


# ---------------------------------------------------------------------------
# Deterministic parameter init and pure-JAX reference for validation
# ---------------------------------------------------------------------------
def init_params(key, in_c, out_c, eps=1e-5):
    ks = jax.random.split(key, 10)
    w1 = jax.random.normal(ks[0], (in_c, out_c), jnp.float32) * 0.2
    dw = jax.random.normal(ks[1], (3, 3, out_c), jnp.float32) * 0.2
    gamma1 = jax.random.uniform(ks[2], (out_c,), jnp.float32, 0.5, 1.5)
    beta1 = jax.random.normal(ks[3], (out_c,), jnp.float32) * 0.1
    rmean1 = jax.random.normal(ks[4], (out_c,), jnp.float32) * 0.1
    rvar1 = jax.random.uniform(ks[5], (out_c,), jnp.float32, 0.5, 1.5)
    gamma2 = jax.random.uniform(ks[6], (out_c,), jnp.float32, 0.5, 1.5)
    beta2 = jax.random.normal(ks[7], (out_c,), jnp.float32) * 0.1
    rmean2 = jax.random.normal(ks[8], (out_c,), jnp.float32) * 0.1
    rvar2 = jax.random.uniform(ks[9], (out_c,), jnp.float32, 0.5, 1.5)
    scale1 = gamma1 / jnp.sqrt(rvar1 + eps)
    shift1 = beta1 - rmean1 * scale1
    scale2 = gamma2 / jnp.sqrt(rvar2 + eps)
    shift2 = beta2 - rmean2 * scale2
    return {"w1": w1, "dw": dw, "scale1": scale1, "shift1": shift1,
            "scale2": scale2, "shift2": shift2}


def reference_forward(x_nhwc, params, stride=1):
    """Pure-JAX NHWC reference (BN folded -- mathematically identical)."""
    w1s = params["w1"] * params["scale1"][None, :]
    dws = params["dw"] * params["scale2"][None, None, :]
    conv = jnp.maximum(jnp.einsum("nhwc,cd->nhwd", x_nhwc, w1s)
                       + params["shift1"], 0.0)
    N, H, W, C = conv.shape
    hout = (H - 1) // stride + 1
    wout = (W - 1) // stride + 1
    xp = jnp.pad(conv, ((0, 0), (1, 1), (1, 1), (0, 0)))
    acc = jnp.zeros((N, hout, wout, C), jnp.float32)
    for kh in range(3):
        for kw in range(3):
            acc = acc + xp[:, kh:kh + stride * (hout - 1) + 1:stride,
                           kw:kw + stride * (wout - 1) + 1:stride, :] * dws[kh, kw]
    sep = jnp.maximum(acc + params["shift2"], 0.0)
    return conv, sep


if __name__ == "__main__":
    key = jax.random.PRNGKey(0)
    k_x, k_p = jax.random.split(key)

    N, H, W = 2, 16, 16
    in_c, out_c = 4, 8

    # layout: the kernel works in NHWC (W and C folded onto lanes); an NCHW
    # PyTorch input (2, 4, 16, 16) would simply be transposed to NHWC first.
    x = jax.random.normal(k_x, (N, H, W, in_c), jnp.float32)
    params = init_params(k_p, in_c, out_c)

    # stride=1, return_both=True: batch-folded single-step path + conv output.
    conv, sep = conv_sep_block(x, params, stride=1, return_both=True)
    jax.block_until_ready(sep)
    conv_ref, sep_ref = reference_forward(x, params, stride=1)
    assert conv.shape == (N, H, W, out_c) and sep.shape == (N, H, W, out_c)
    assert jnp.allclose(conv, conv_ref, atol=1e-4, rtol=1e-4), "conv mismatch"
    assert jnp.allclose(sep, sep_ref, atol=1e-4, rtol=1e-4), "sep mismatch"

    # stride=2: strided sublane reads + phase-permuted lanes (exact, no
    # selection matmuls any more).
    sep2 = conv_sep_block(x, params, stride=2, return_both=False)
    jax.block_until_ready(sep2)
    _, sep2_ref = reference_forward(x, params, stride=2)
    assert sep2.shape == (N, H // 2, W // 2, out_c)
    assert jnp.allclose(sep2, sep2_ref, atol=1e-3, rtol=1e-3), "strided mismatch"

    print("KERNEL_OK")
</pallas_src>

<mosaic_0001>
module attributes {stable_mosaic.version = 11 : i64} {
  func.func @_fused_kernel(%arg0: i32, %arg1: memref<32x64xf32, #tpu.memory_space<vmem>>, %arg2: memref<64x128xf32, #tpu.memory_space<vmem>>, %arg3: memref<1x128xf32, #tpu.memory_space<vmem>>, %arg4: memref<9x128xf32, #tpu.memory_space<vmem>>, %arg5: memref<1x128xf32, #tpu.memory_space<vmem>>, %arg6: memref<32x128xf32, #tpu.memory_space<vmem>>, %arg7: memref<32x128xf32, #tpu.memory_space<vmem>>, %arg8: memref<36x128xf32, #tpu.memory_space<vmem>>) attributes {dimension_semantics = [#tpu.dimension_semantics<parallel>], iteration_bounds = array<i64: 1>, scalar_prefetch = 0 : i64, scratch_operands = 1 : i64, tpu.core_type = #tpu.core_type<tc>, window_params = [{transform_indices = @transform_0, window_bounds = array<i64: 32, 64>}, {pipeline_mode = #tpu.pipeline_mode<synchronous>, transform_indices = @transform_1, window_bounds = array<i64: 64, 128>}, {pipeline_mode = #tpu.pipeline_mode<synchronous>, transform_indices = @transform_2, window_bounds = array<i64: 1, 128>}, {pipeline_mode = #tpu.pipeline_mode<synchronous>, transform_indices = @transform_3, window_bounds = array<i64: 9, 128>}, {pipeline_mode = #tpu.pipeline_mode<synchronous>, transform_indices = @transform_4, window_bounds = array<i64: 1, 128>}, {transform_indices = @transform_5, window_bounds = array<i64: 32, 128>}, {transform_indices = @transform_6, window_bounds = array<i64: 32, 128>}]} {
    %c0 = arith.constant 0 : index
    %c0_0 = arith.constant 0 : index
    %0 = vector.load %arg1[%c0, %c0_0] : memref<32x64xf32, #tpu.memory_space<vmem>>, vector<32x64xf32>
    %c0_1 = arith.constant 0 : index
    %c0_2 = arith.constant 0 : index
    %1 = vector.load %arg2[%c0_1, %c0_2] : memref<64x128xf32, #tpu.memory_space<vmem>>, vector<64x128xf32>
    %cst = arith.constant dense<0.000000e+00> : vector<32x128xf32>
    %2 = tpu.matmul %0, %1, %cst {dimension_numbers = #tpu.dot_dimension_numbers<[1], [0], [0], [1], [0, 0, 1, 1], [], []>} : vector<32x64xf32>, vector<64x128xf32>, vector<32x128xf32> -> vector<32x128xf32>
    %c0_3 = arith.constant 0 : index
    %c0_4 = arith.constant 0 : index
    %3 = vector.load %arg3[%c0_3, %c0_4] : memref<1x128xf32, #tpu.memory_space<vmem>>, vector<1x128xf32>
    %4 = vector.broadcast %3 : vector<1x128xf32> to vector<32x128xf32>
    %5 = arith.addf %2, %4 : vector<32x128xf32>
    %cst_5 = arith.constant 0.000000e+00 : f32
    %6 = vector.broadcast %cst_5 : f32 to vector<32x128xf32>
    %7 = arith.maximumf %5, %6 : vector<32x128xf32>
    %c0_6 = arith.constant 0 : index
    %c0_7 = arith.constant 0 : index
    %8 = vector.load %arg7[%c0_6, %c0_7] : memref<32x128xf32, #tpu.memory_space<vmem>>, vector<32x128xf32>
    tpu.vector_store %arg7[%c0_6, %c0_7], %7 {strides = array<i32>} : memref<32x128xf32, #tpu.memory_space<vmem>>, vector<32x128xf32>,
    %9 = tpu.iota {dimensions = array<i32: 1>} : vector<16x128xi32>
    %c8_i32 = arith.constant 8 : i32
    %10 = vector.broadcast %c8_i32 : i32 to vector<16x128xi32>
    %11 = arith.cmpi sge, %9, %10 : vector<16x128xi32>
    %c120_i32 = arith.constant 120 : i32
    %12 = vector.broadcast %c120_i32 : i32 to vector<16x128xi32>
    %13 = arith.cmpi slt, %9, %12 : vector<16x128xi32>
    %c0_8 = arith.constant 0 : index
    %c0_9 = arith.constant 0 : index
    %14 = vector.load %arg4[%c0_8, %c0_9] : memref<9x128xf32, #tpu.memory_space<vmem>>, vector<9x128xf32>
    %c0_10 = arith.constant 0 : index
    %c0_11 = arith.constant 0 : index
    %15 = vector.load %arg5[%c0_10, %c0_11] : memref<1x128xf32, #tpu.memory_space<vmem>>, vector<1x128xf32>
    %cst_12 = arith.constant 0.000000e+00 : f32
    %16 = vector.broadcast %cst_12 : f32 to vector<1x128xf32>
    %c0_13 = arith.constant 0 : index
    %c0_14 = arith.constant 0 : index
    %17 = vector.load %arg8[%c0_13, %c0_14] : memref<36x128xf32, #tpu.memory_space<vmem>>, vector<1x128xf32>
    tpu.vector_store %arg8[%c0_13, %c0_14], %16 {strides = array<i32>} : memref<36x128xf32, #tpu.memory_space<vmem>>, vector<1x128xf32>,
    %18 = vector.extract_strided_slice %7 {offsets = [0, 0], sizes = [16, 128], strides = [1, 1]} : vector<32x128xf32> to vector<16x128xf32>
    %c1 = arith.constant 1 : index
    %c0_15 = arith.constant 0 : index
    %19 = vector.load %arg8[%c1, %c0_15] : memref<36x128xf32, #tpu.memory_space<vmem>>, vector<16x128xf32>
    tpu.vector_store %arg8[%c1, %c0_15], %18 {strides = array<i32>} : memref<36x128xf32, #tpu.memory_space<vmem>>, vector<16x128xf32>,
    %c17 = arith.constant 17 : index
    %c0_16 = arith.constant 0 : index
    %20 = vector.load %arg8[%c17, %c0_16] : memref<36x128xf32, #tpu.memory_space<vmem>>, vector<1x128xf32>
    tpu.vector_store %arg8[%c17, %c0_16], %16 {strides = array<i32>} : memref<36x128xf32, #tpu.memory_space<vmem>>, vector<1x128xf32>,
    %c0_17 = arith.constant 0 : index
    %c0_18 = arith.constant 0 : index
    %21 = vector.load %arg8[%c0_17, %c0_18] : memref<36x128xf32, #tpu.memory_space<vmem>>, vector<16x128xf32>
    %c8_i32_19 = arith.constant 8 : i32
    %22 = tpu.dynamic_rotate %21 by %c8_i32_19 dim 1 : vector<16x128xf32>, i32 -> vector<16x128xf32>
    %cst_20 = arith.constant 0.000000e+00 : f32
    %23 = vector.broadcast %cst_20 : f32 to vector<16x128xf32>
    %24 = arith.select %11, %22, %23 : vector<16x128xi1>, vector<16x128xf32>
    %c120_i32_21 = arith.constant 120 : i32
    %25 = tpu.dynamic_rotate %21 by %c120_i32_21 dim 1 : vector<16x128xf32>, i32 -> vector<16x128xf32>
    %cst_22 = arith.constant 0.000000e+00 : f32
    %26 = vector.broadcast %cst_22 : f32 to vector<16x128xf32>
    %27 = arith.select %13, %25, %26 : vector<16x128xi1>, vector<16x128xf32>
    %28 = vector.extract_strided_slice %14 {offsets = [0, 0], sizes = [1, 128], strides = [1, 1]} : vector<9x128xf32> to vector<1x128xf32>
    %29 = vector.broadcast %28 : vector<1x128xf32> to vector<16x128xf32>
    %30 = arith.mulf %24, %29 : vector<16x128xf32>
    %31 = vector.extract_strided_slice %14 {offsets = [1, 0], sizes = [1, 128], strides = [1, 1]} : vector<9x128xf32> to vector<1x128xf32>
    %32 = vector.broadcast %31 : vector<1x128xf32> to vector<16x128xf32>
    %33 = arith.mulf %21, %32 : vector<16x128xf32>
    %34 = arith.addf %30, %33 : vector<16x128xf32>
    %35 = vector.extract_strided_slice %14 {offsets = [2, 0], sizes = [1, 128], strides = [1, 1]} : vector<9x128xf32> to vector<1x128xf32>
    %36 = vector.broadcast %35 : vector<1x128xf32> to vector<16x128xf32>
    %37 = arith.mulf %27, %36 : vector<16x128xf32>
    %38 = arith.addf %34, %37 : vector<16x128xf32>
    %c1_23 = arith.constant 1 : index
    %c0_24 = arith.constant 0 : index
    %39 = vector.load %arg8[%c1_23, %c0_24] : memref<36x128xf32, #tpu.memory_space<vmem>>, vector<16x128xf32>
    %c8_i32_25 = arith.constant 8 : i32
    %40 = tpu.dynamic_rotate %39 by %c8_i32_25 dim 1 : vector<16x128xf32>, i32 -> vector<16x128xf32>
    %cst_26 = arith.constant 0.000000e+00 : f32
    %41 = vector.broadcast %cst_26 : f32 to vector<16x128xf32>
    %42 = arith.select %11, %40, %41 : vector<16x128xi1>, vector<16x128xf32>
    %c120_i32_27 = arith.constant 120 : i32
    %43 = tpu.dynamic_rotate %39 by %c120_i32_27 dim 1 : vector<16x128xf32>, i32 -> vector<16x128xf32>
    %cst_28 = arith.constant 0.000000e+00 : f32
    %44 = vector.broadcast %cst_28 : f32 to vector<16x128xf32>
    %45 = arith.select %13, %43, %44 : vector<16x128xi1>, vector<16x128xf32>
    %46 = vector.extract_strided_slice %14 {offsets = [3, 0], sizes = [1, 128], strides = [1, 1]} : vector<9x128xf32> to vector<1x128xf32>
    %47 = vector.broadcast %46 : vector<1x128xf32> to vector<16x128xf32>
    %48 = arith.mulf %42, %47 : vector<16x128xf32>
    %49 = arith.addf %38, %48 : vector<16x128xf32>
    %50 = vector.extract_strided_slice %14 {offsets = [4, 0], sizes = [1, 128], strides = [1, 1]} : vector<9x128xf32> to vector<1x128xf32>
    %51 = vector.broadcast %50 : vector<1x128xf32> to vector<16x128xf32>
    %52 = arith.mulf %39, %51 : vector<16x128xf32>
    %53 = arith.addf %49, %52 : vector<16x128xf32>
    %54 = vector.extract_strided_slice %14 {offsets = [5, 0], sizes = [1, 128], strides = [1, 1]} : vector<9x128xf32> to vector<1x128xf32>
    %55 = vector.broadcast %54 : vector<1x128xf32> to vector<16x128xf32>
    %56 = arith.mulf %45, %55 : vector<16x128xf32>
    %57 = arith.addf %53, %56 : vector<16x128xf32>
    %c2 = arith.constant 2 : index
    %c0_29 = arith.constant 0 : index
    %58 = vector.load %arg8[%c2, %c0_29] : memref<36x128xf32, #tpu.memory_space<vmem>>, vector<16x128xf32>
    %c8_i32_30 = arith.constant 8 : i32
    %59 = tpu.dynamic_rotate %58 by %c8_i32_30 dim 1 : vector<16x128xf32>, i32 -> vector<16x128xf32>
    %cst_31 = arith.constant 0.000000e+00 : f32
    %60 = vector.broadcast %cst_31 : f32 to vector<16x128xf32>
    %61 = arith.select %11, %59, %60 : vector<16x128xi1>, vector<16x128xf32>
    %c120_i32_32 = arith.constant 120 : i32
    %62 = tpu.dynamic_rotate %58 by %c120_i32_32 dim 1 : vector<16x128xf32>, i32 -> vector<16x128xf32>
    %cst_33 = arith.constant 0.000000e+00 : f32
    %63 = vector.broadcast %cst_33 : f32 to vector<16x128xf32>
    %64 = arith.select %13, %62, %63 : vector<16x128xi1>, vector<16x128xf32>
    %65 = vector.extract_strided_slice %14 {offsets = [6, 0], sizes = [1, 128], strides = [1, 1]} : vector<9x128xf32> to vector<1x128xf32>
    %66 = vector.broadcast %65 : vector<1x128xf32> to vector<16x128xf32>
    %67 = arith.mulf %61, %66 : vector<16x128xf32>
    %68 = arith.addf %57, %67 : vector<16x128xf32>
    %69 = vector.extract_strided_slice %14 {offsets = [7, 0], sizes = [1, 128], strides = [1, 1]} : vector<9x128xf32> to vector<1x128xf32>
    %70 = vector.broadcast %69 : vector<1x128xf32> to vector<16x128xf32>
    %71 = arith.mulf %58, %70 : vector<16x128xf32>
    %72 = arith.addf %68, %71 : vector<16x128xf32>
    %73 = vector.extract_strided_slice %14 {offsets = [8, 0], sizes = [1, 128], strides = [1, 1]} : vector<9x128xf32> to vector<1x128xf32>
    %74 = vector.broadcast %73 : vector<1x128xf32> to vector<16x128xf32>
    %75 = arith.mulf %64, %74 : vector<16x128xf32>
    %76 = arith.addf %72, %75 : vector<16x128xf32>
    %77 = vector.broadcast %15 : vector<1x128xf32> to vector<16x128xf32>
    %78 = arith.addf %76, %77 : vector<16x128xf32>
    %cst_34 = arith.constant 0.000000e+00 : f32
    %79 = vector.broadcast %cst_34 : f32 to vector<16x128xf32>
    %80 = arith.maximumf %78, %79 : vector<16x128xf32>
    %c0_35 = arith.constant 0 : index
    %c0_36 = arith.constant 0 : index
    %81 = vector.load %arg6[%c0_35, %c0_36] : memref<32x128xf32, #tpu.memory_space<vmem>>, vector<16x128xf32>
    tpu.vector_store %arg6[%c0_35, %c0_36], %80 {strides = array<i32>} : memref<32x128xf32, #tpu.memory_space<vmem>>, vector<16x128xf32>,
    %c18 = arith.constant 18 : index
    %c0_37 = arith.constant 0 : index
    %82 = vector.load %arg8[%c18, %c0_37] : memref<36x128xf32, #tpu.memory_space<vmem>>, vector<1x128xf32>
    tpu.vector_store %arg8[%c18, %c0_37], %16 {strides = array<i32>} : memref<36x128xf32, #tpu.memory_space<vmem>>, vector<1x128xf32>,
    %83 = vector.extract_strided_slice %7 {offsets = [16, 0], sizes = [16, 128], strides = [1, 1]} : vector<32x128xf32> to vector<16x128xf32>
    %c19 = arith.constant 19 : index
    %c0_38 = arith.constant 0 : index
    %84 = vector.load %arg8[%c19, %c0_38] : memref<36x128xf32, #tpu.memory_space<vmem>>, vector<16x128xf32>
    tpu.vector_store %arg8[%c19, %c0_38], %83 {strides = array<i32>} : memref<36x128xf32, #tpu.memory_space<vmem>>, vector<16x128xf32>,
    %c35 = arith.constant 35 : index
    %c0_39 = arith.constant 0 : index
    %85 = vector.load %arg8[%c35, %c0_39] : memref<36x128xf32, #tpu.memory_space<vmem>>, vector<1x128xf32>
    tpu.vector_store %arg8[%c35, %c0_39], %16 {strides = array<i32>} : memref<36x128xf32, #tpu.memory_space<vmem>>, vector<1x128xf32>,
    %c18_40 = arith.constant 18 : index
    %c0_41 = arith.constant 0 : index
    %86 = vector.load %arg8[%c18_40, %c0_41] : memref<36x128xf32, #tpu.memory_space<vmem>>, vector<16x128xf32>
    %c8_i32_42 = arith.constant 8 : i32
    %87 = tpu.dynamic_rotate %86 by %c8_i32_42 dim 1 : vector<16x128xf32>, i32 -> vector<16x128xf32>
    %cst_43 = arith.constant 0.000000e+00 : f32
    %88 = vector.broadcast %cst_43 : f32 to vector<16x128xf32>
    %89 = arith.select %11, %87, %88 : vector<16x128xi1>, vector<16x128xf32>
    %c120_i32_44 = arith.constant 120 : i32
    %90 = tpu.dynamic_rotate %86 by %c120_i32_44 dim 1 : vector<16x128xf32>, i32 -> vector<16x128xf32>
    %cst_45 = arith.constant 0.000000e+00 : f32
    %91 = vector.broadcast %cst_45 : f32 to vector<16x128xf32>
    %92 = arith.select %13, %90, %91 : vector<16x128xi1>, vector<16x128xf32>
    %93 = vector.extract_strided_slice %14 {offsets = [0, 0], sizes = [1, 128], strides = [1, 1]} : vector<9x128xf32> to vector<1x128xf32>
    %94 = vector.broadcast %93 : vector<1x128xf32> to vector<16x128xf32>
    %95 = arith.mulf %89, %94 : vector<16x128xf32>
    %96 = vector.extract_strided_slice %14 {offsets = [1, 0], sizes = [1, 128], strides = [1, 1]} : vector<9x128xf32> to vector<1x128xf32>
    %97 = vector.broadcast %96 : vector<1x128xf32> to vector<16x128xf32>
    %98 = arith.mulf %86, %97 : vector<16x128xf32>
    %99 = arith.addf %95, %98 : vector<16x128xf32>
    %100 = vector.extract_strided_slice %14 {offsets = [2, 0], sizes = [1, 128], strides = [1, 1]} : vector<9x128xf32> to vector<1x128xf32>
    %101 = vector.broadcast %100 : vector<1x128xf32> to vector<16x128xf32>
    %102 = arith.mulf %92, %101 : vector<16x128xf32>
    %103 = arith.addf %99, %102 : vector<16x128xf32>
    %c19_46 = arith.constant 19 : index
    %c0_47 = arith.constant 0 : index
    %104 = vector.load %arg8[%c19_46, %c0_47] : memref<36x128xf32, #tpu.memory_space<vmem>>, vector<16x128xf32>
    %c8_i32_48 = arith.constant 8 : i32
    %105 = tpu.dynamic_rotate %104 by %c8_i32_48 dim 1 : vector<16x128xf32>, i32 -> vector<16x128xf32>
    %cst_49 = arith.constant 0.000000e+00 : f32
    %106 = vector.broadcast %cst_49 : f32 to vector<16x128xf32>
    %107 = arith.select %11, %105, %106 : vector<16x128xi1>, vector<16x128xf32>
    %c120_i32_50 = arith.constant 120 : i32
    %108 = tpu.dynamic_rotate %104 by %c120_i32_50 dim 1 : vector<16x128xf32>, i32 -> vector<16x128xf32>
    %cst_51 = arith.constant 0.000000e+00 : f32
    %109 = vector.broadcast %cst_51 : f32 to vector<16x128xf32>
    %110 = arith.select %13, %108, %109 : vector<16x128xi1>, vector<16x128xf32>
    %111 = vector.extract_strided_slice %14 {offsets = [3, 0], sizes = [1, 128], strides = [1, 1]} : vector<9x128xf32> to vector<1x128xf32>
    %112 = vector.broadcast %111 : vector<1x128xf32> to vector<16x128xf32>
    %113 = arith.mulf %107, %112 : vector<16x128xf32>
    %114 = arith.addf %103, %113 : vector<16x128xf32>
    %115 = vector.extract_strided_slice %14 {offsets = [4, 0], sizes = [1, 128], strides = [1, 1]} : vector<9x128xf32> to vector<1x128xf32>
    %116 = vector.broadcast %115 : vector<1x128xf32> to vector<16x128xf32>
    %117 = arith.mulf %104, %116 : vector<16x128xf32>
    %118 = arith.addf %114, %117 : vector<16x128xf32>
    %119 = vector.extract_strided_slice %14 {offsets = [5, 0], sizes = [1, 128], strides = [1, 1]} : vector<9x128xf32> to vector<1x128xf32>
    %120 = vector.broadcast %119 : vector<1x128xf32> to vector<16x128xf32>
    %121 = arith.mulf %110, %120 : vector<16x128xf32>
    %122 = arith.addf %118, %121 : vector<16x128xf32>
    %c20 = arith.constant 20 : index
    %c0_52 = arith.constant 0 : index
    %123 = vector.load %arg8[%c20, %c0_52] : memref<36x128xf32, #tpu.memory_space<vmem>>, vector<16x128xf32>
    %c8_i32_53 = arith.constant 8 : i32
    %124 = tpu.dynamic_rotate %123 by %c8_i32_53 dim 1 : vector<16x128xf32>, i32 -> vector<16x128xf32>
    %cst_54 = arith.constant 0.000000e+00 : f32
    %125 = vector.broadcast %cst_54 : f32 to vector<16x128xf32>
    %126 = arith.select %11, %124, %125 : vector<16x128xi1>, vector<16x128xf32>
    %c120_i32_55 = arith.constant 120 : i32
    %127 = tpu.dynamic_rotate %123 by %c120_i32_55 dim 1 : vector<16x128xf32>, i32 -> vector<16x128xf32>
    %cst_56 = arith.constant 0.000000e+00 : f32
    %128 = vector.broadcast %cst_56 : f32 to vector<16x128xf32>
    %129 = arith.select %13, %127, %128 : vector<16x128xi1>, vector<16x128xf32>
    %130 = vector.extract_strided_slice %14 {offsets = [6, 0], sizes = [1, 128], strides = [1, 1]} : vector<9x128xf32> to vector<1x128xf32>
    %131 = vector.broadcast %130 : vector<1x128xf32> to vector<16x128xf32>
    %132 = arith.mulf %126, %131 : vector<16x128xf32>
    %133 = arith.addf %122, %132 : vector<16x128xf32>
    %134 = vector.extract_strided_slice %14 {offsets = [7, 0], sizes = [1, 128], strides = [1, 1]} : vector<9x128xf32> to vector<1x128xf32>
    %135 = vector.broadcast %134 : vector<1x128xf32> to vector<16x128xf32>
    %136 = arith.mulf %123, %135 : vector<16x128xf32>
    %137 = arith.addf %133, %136 : vector<16x128xf32>
    %138 = vector.extract_strided_slice %14 {offsets = [8, 0], sizes = [1, 128], strides = [1, 1]} : vector<9x128xf32> to vector<1x128xf32>
    %139 = vector.broadcast %138 : vector<1x128xf32> to vector<16x128xf32>
    %140 = arith.mulf %129, %139 : vector<16x128xf32>
    %141 = arith.addf %137, %140 : vector<16x128xf32>
    %142 = vector.broadcast %15 : vector<1x128xf32> to vector<16x128xf32>
    %143 = arith.addf %141, %142 : vector<16x128xf32>
    %cst_57 = arith.constant 0.000000e+00 : f32
    %144 = vector.broadcast %cst_57 : f32 to vector<16x128xf32>
    %145 = arith.maximumf %143, %144 : vector<16x128xf32>
    %c16 = arith.constant 16 : index
    %c0_58 = arith.constant 0 : index
    %146 = vector.load %arg6[%c16, %c0_58] : memref<32x128xf32, #tpu.memory_space<vmem>>, vector<16x128xf32>
    tpu.vector_store %arg6[%c16, %c0_58], %145 {strides = array<i32>} : memref<32x128xf32, #tpu.memory_space<vmem>>, vector<16x128xf32>,
    return
  }
  func.func @transform_0(%arg0: i32) -> (i32, i32) {
    %c0_i32 = arith.constant 0 : i32
    %c0_i32_0 = arith.constant 0 : i32
    return %arg0, %c0_i32 : i32, i32
  }
  func.func @transform_1(%arg0: i32) -> (i32, i32) {
    %c0_i32 = arith.constant 0 : i32
    %c0_i32_0 = arith.constant 0 : i32
    %c0_i32_1 = arith.constant 0 : i32
    return %c0_i32, %c0_i32_0 : i32, i32
  }
  func.func @transform_2(%arg0: i32) -> (i32, i32) {
    %c0_i32 = arith.constant 0 : i32
    %c0_i32_0 = arith.constant 0 : i32
    %c0_i32_1 = arith.constant 0 : i32
    return %c0_i32, %c0_i32_0 : i32, i32
  }
  func.func @transform_3(%arg0: i32) -> (i32, i32) {
    %c0_i32 = arith.constant 0 : i32
    %c0_i32_0 = arith.constant 0 : i32
    %c0_i32_1 = arith.constant 0 : i32
    return %c0_i32, %c0_i32_0 : i32, i32
  }
  func.func @transform_4(%arg0: i32) -> (i32, i32) {
    %c0_i32 = arith.constant 0 : i32
    %c0_i32_0 = arith.constant 0 : i32
    %c0_i32_1 = arith.constant 0 : i32
    return %c0_i32, %c0_i32_0 : i32, i32
  }
  func.func @transform_5(%arg0: i32) -> (i32, i32) {
    %c0_i32 = arith.constant 0 : i32
    %c0_i32_0 = arith.constant 0 : i32
    return %arg0, %c0_i32 : i32, i32
  }
  func.func @transform_6(%arg0: i32) -> (i32, i32) {
    %c0_i32 = arith.constant 0 : i32
    %c0_i32_0 = arith.constant 0 : i32
    return %arg0, %c0_i32 : i32, i32
  }
}

</mosaic_0001>

<llo_original>
// kernel: tile.17
$region0: #{tile.17}
  #allocation0 [shape = 's32[1]{0}', space=sflag, size = 0x4, scoped, tag = 'scoped memory for tile.17']
  %s0 = inlined_call_operand.vmem [shape: f32[8], index: 0, kind: input, shape index: {}]
  %s1 = inlined_call_operand.vmem [shape: f32[16,8], index: 1, kind: output, shape index: {}]
  // Predicated region
  $region2: #{tile.17} parent=0 // pred_check
    _
  $region3: #{tile.17} parent=0 // pred_check_branch
    %3 = sbr.rel (0) target = $region5
  $region4: #{tile.17} parent=0 // pred_region
    _
  $region5: #{tile.17} parent=0 // pred_fallthru
    _
  %v4 = vld [vmem:[%s0] ss:$0 sm:$0xff]
  %5 = vst [vmem:[%s1] sm:$0xff] %v4
  %s6 = scalar_lea.vmem %s1, 8
  %7 = vst [vmem:[%s6] sm:$0xff] %v4

// kernel: tile.18
$region0: #{tile.18}
  %s0 = inlined_call_operand.vmem [shape: f32[16,8], index: 0, kind: input, shape index: {}]
  %s1 = inlined_call_operand.vmem [shape: f32[1,128], index: 1, kind: output, shape index: {}]
  $region1: #{tile.18} parent=0
    #allocation0 [shape = 'u8[4096]{0}', space=vmem, size = 0x1000, scoped, tag = 'scoped mem for output reshape']
    %v2 = vld [vmem:[%s0] sm:$0x1]
    %vm3 = vcmask 64512
    %4 = vst.msk [vmem:[#allocation0] sm:$0x1] %vm3, %v2
    %s5 = scalar_lea.vmem %s0, 15
    %v6 = vld [vmem:[%s5] sm:$0x1]
    %7 = vrot.lane.b32.xlu0 %v6, 120
    %v8 = vpop.permute.xlu0 %7
    %vm9 = vcmask 1048512
    %10 = vst.msk [vmem:[#allocation0] sm:$0x1] %vm9, %v8
    %s11 = scalar_lea.vmem %s0, 14
    %v12 = vld [vmem:[%s11] sm:$0x1]
    %13 = vrot.lane.b32.xlu0 %v12, 112
    %v14 = vpop.permute.xlu0 %13
    %vm15 = vcmask 982912
    %16 = vst.msk [vmem:[#allocation0] sm:$0x1] %vm15, %v14
    %s17 = scalar_lea.vmem %s0, 13
    %v18 = vld [vmem:[%s17] sm:$0x1]
    %19 = vrot.lane.b32.xlu0 %v18, 104
    %v20 = vpop.permute.xlu0 %19
    %vm21 = vcmask 917312
    %22 = vst.msk [vmem:[#allocation0] sm:$0x1] %vm21, %v20
    %s23 = scalar_lea.vmem %s0, 12
    %v24 = vld [vmem:[%s23] sm:$0x1]
    %25 = vrot.lane.b32.xlu0 %v24, 96
    %v26 = vpop.permute.xlu0 %25
    %vm27 = vcmask 851712
    %28 = vst.msk [vmem:[#allocation0] sm:$0x1] %vm27, %v26
    %s29 = scalar_lea.vmem %s0, 11
    %v30 = vld [vmem:[%s29] sm:$0x1]
    %31 = vrot.lane.b32.xlu0 %v30, 88
    %v32 = vpop.permute.xlu0 %31
    %vm33 = vcmask 786112
    %34 = vst.msk [vmem:[#allocation0] sm:$0x1] %vm33, %v32
    %s35 = scalar_lea.vmem %s0, 10
    %v36 = vld [vmem:[%s35] sm:$0x1]
    %37 = vrot.lane.b32.xlu0 %v36, 80
    %v38 = vpop.permute.xlu0 %37
    %vm39 = vcmask 720512
    %40 = vst.msk [vmem:[#allocation0] sm:$0x1] %vm39, %v38
    %s41 = scalar_lea.vmem %s0, 9
    %v42 = vld [vmem:[%s41] sm:$0x1]
    %43 = vrot.lane.b32.xlu0 %v42, 72
    %v44 = vpop.permute.xlu0 %43
    %vm45 = vcmask 654912
    %46 = vst.msk [vmem:[#allocation0] sm:$0x1] %vm45, %v44
    %s47 = scalar_lea.vmem %s0, 8
    %v48 = vld [vmem:[%s47] sm:$0x1]
    %49 = vrot.lane.b32.xlu0 %v48, 64
    %v50 = vpop.permute.xlu0 %49
    %vm51 = vcmask 589312
    %52 = vst.msk [vmem:[#allocation0] sm:$0x1] %vm51, %v50
    %s53 = scalar_lea.vmem %s0, 7
    %v54 = vld [vmem:[%s53] sm:$0x1]
    %55 = vrot.lane.b32.xlu0 %v54, 56
    %v56 = vpop.permute.xlu0 %55
    %vm57 = vcmask 523712
    %58 = vst.msk [vmem:[#allocation0] sm:$0x1] %vm57, %v56
    %s59 = scalar_lea.vmem %s0, 6
    %v60 = vld [vmem:[%s59] sm:$0x1]
    %61 = vrot.lane.b32.xlu0 %v60, 48
    %v62 = vpop.permute.xlu0 %61
    %vm63 = vcmask 458112
    %64 = vst.msk [vmem:[#allocation0] sm:$0x1] %vm63, %v62
    %s65 = scalar_lea.vmem %s0, 5
    %v66 = vld [vmem:[%s65] sm:$0x1]
    %67 = vrot.lane.b32.xlu0 %v66, 40
    %v68 = vpop.permute.xlu0 %67
    %vm69 = vcmask 392512
    %70 = vst.msk [vmem:[#allocation0] sm:$0x1] %vm69, %v68
    %s71 = scalar_lea.vmem %s0, 4
    %v72 = vld [vmem:[%s71] sm:$0x1]
    %73 = vrot.lane.b32.xlu0 %v72, 32
    %v74 = vpop.permute.xlu0 %73
    %vm75 = vcmask 326912
    %76 = vst.msk [vmem:[#allocation0] sm:$0x1] %vm75, %v74
    %s77 = scalar_lea.vmem %s0, 3
    %v78 = vld [vmem:[%s77] sm:$0x1]
    %79 = vrot.lane.b32.xlu0 %v78, 24
    %v80 = vpop.permute.xlu0 %79
    %vm81 = vcmask 261312
    %82 = vst.msk [vmem:[#allocation0] sm:$0x1] %vm81, %v80
    %s83 = scalar_lea.vmem %s0, 2
    %v84 = vld [vmem:[%s83] sm:$0x1]
    %85 = vrot.lane.b32.xlu0 %v84, 16
    %v86 = vpop.permute.xlu0 %85
    %vm87 = vcmask 195712
    %88 = vst.msk [vmem:[#allocation0] sm:$0x1] %vm87, %v86
    %s89 = scalar_lea.vmem %s0, 1
    %v90 = vld [vmem:[%s89] sm:$0x1]
    %91 = vrot.lane.b32.xlu0 %v90, 8
    %v92 = vpop.permute.xlu0 %91
    %vm93 = vcmask 130112
    %94 = vst.msk [vmem:[#allocation0] sm:$0x1] %vm93, %v92
    %s96 = sshllo.u32 0, 1
    %v98 = vld [vmem:[#allocation0] sm:%s96]
    %s99 = sshllo.u32 0, 1
    %100 = vst [vmem:[%s1] sm:%s99] %v98

// kernel: tile.22
$region0: #{tile.22}
  %s0 = inlined_call_operand.vmem [shape: f32[9,16,8], index: 0, kind: input, shape index: {}]
  %s1 = inlined_call_operand.vmem [shape: f32[9,128], index: 1, kind: output, shape index: {}]
  %s2 = smov 3
  %v3 = vld [vmem:[%s0] ss:$16 sm:%s2]
  %s4 = smov 12
  %v5 = vld [vmem:[%s0] ss:$16 sm:%s4]
  %vm6 = vcmask 1043458
  %v7 = vsel %vm6, %v5, %v3
  %s8 = smov 48
  %v9 = vld [vmem:[%s0] ss:$16 sm:%s8]
  %vm10 = vcmask 1045508
  %v11 = vsel %vm10, %v9, %v7
  %s12 = smov 192
  %v13 = vld [vmem:[%s0] ss:$16 sm:%s12]
  %vm14 = vcmask 1047558
  %v15 = vsel %vm14, %v13, %v11
  %vm16 = vcmask 64512
  %17 = vst.msk [vmem:[%s1] sm:$0xff] %vm16, %v15
  %s18 = scalar_lea.vmem %s0, 128
  %v19 = vld [vmem:[%s18] sm:$0x1]
  %vm20 = vcmask 64512
  %s21 = scalar_lea.vmem %s1, 8
  %22 = vst.msk [vmem:[%s21] sm:$0x1] %vm20, %v19
  %s23 = scalar_lea.vmem %s0, 15
  %s24 = smov 3
  %v25 = vld [vmem:[%s23] ss:$16 sm:%s24]
  %s26 = scalar_lea.vmem %s0, 15
  %s27 = smov 12
  %v28 = vld [vmem:[%s26] ss:$16 sm:%s27]
  %vm29 = vcmask 1043458
  %v30 = vsel %vm29, %v28, %v25
  %s31 = scalar_lea.vmem %s0, 15
  %s32 = smov 48
  %v33 = vld [vmem:[%s31] ss:$16 sm:%s32]
  %vm34 = vcmask 1045508
  %v35 = vsel %vm34, %v33, %v30
  %s36 = scalar_lea.vmem %s0, 15
  %s37 = smov 192
  %v38 = vld [vmem:[%s36] ss:$16 sm:%s37]
  %vm39 = vcmask 1047558
  %v40 = vsel %vm39, %v38, %v35
  %41 = vrot.lane.b32.xlu0 %v40, 120
  %v42 = vpop.permute.xlu0 %41
  %vm43 = vcmask 1048512
  %44 = vst.msk [vmem:[%s1] sm:$0xff] %vm43, %v42
  %s45 = scalar_lea.vmem %s0, 143
  %v46 = vld [vmem:[%s45] sm:$0x1]
  %47 = vrot.lane.b32.xlu0 %v46, 120
  %v48 = vpop.permute.xlu0 %47
  %vm49 = vcmask 1048512
  %s50 = scalar_lea.vmem %s1, 8
  %51 = vst.msk [vmem:[%s50] sm:$0x1] %vm49, %v48
  %s52 = scalar_lea.vmem %s0, 14
  %s53 = smov 3
  %v54 = vld [vmem:[%s52] ss:$16 sm:%s53]
  %s55 = scalar_lea.vmem %s0, 14
  %s56 = smov 12
  %v57 = vld [vmem:[%s55] ss:$16 sm:%s56]
  %vm58 = vcmask 1043458
  %v59 = vsel %vm58, %v57, %v54
  %s60 = scalar_lea.vmem %s0, 14
  %s61 = smov 48
  %v62 = vld [vmem:[%s60] ss:$16 sm:%s61]
  %vm63 = vcmask 1045508
  %v64 = vsel %vm63, %v62, %v59
  %s65 = scalar_lea.vmem %s0, 14
  %s66 = smov 192
  %v67 = vld [vmem:[%s65] ss:$16 sm:%s66]
  %vm68 = vcmask 1047558
  %v69 = vsel %vm68, %v67, %v64
  %70 = vrot.lane.b32.xlu0 %v69, 112
  %v71 = vpop.permute.xlu0 %70
  %vm72 = vcmask 982912
  %73 = vst.msk [vmem:[%s1] sm:$0xff] %vm72, %v71
  %s74 = scalar_lea.vmem %s0, 142
  %v75 = vld [vmem:[%s74] sm:$0x1]
  %76 = vrot.lane.b32.xlu0 %v75, 112
  %v77 = vpop.permute.xlu0 %76
  %vm78 = vcmask 982912
  %s79 = scalar_lea.vmem %s1, 8
  %80 = vst.msk [vmem:[%s79] sm:$0x1] %vm78, %v77
  %s81 = scalar_lea.vmem %s0, 13
  %s82 = smov 3
  %v83 = vld [vmem:[%s81] ss:$16 sm:%s82]
  %s84 = scalar_lea.vmem %s0, 13
  %s85 = smov 12
  %v86 = vld [vmem:[%s84] ss:$16 sm:%s85]
  %vm87 = vcmask 1043458
  %v88 = vsel %vm87, %v86, %v83
  %s89 = scalar_lea.vmem %s0, 13
  %s90 = smov 48
  %v91 = vld [vmem:[%s89] ss:$16 sm:%s90]
  %vm92 = vcmask 1045508
  %v93 = vsel %vm92, %v91, %v88
  %s94 = scalar_lea.vmem %s0, 13
  %s95 = smov 192
  %v96 = vld [vmem:[%s94] ss:$16 sm:%s95]
  %vm97 = vcmask 1047558
  %v98 = vsel %vm97, %v96, %v93
  %99 = vrot.lane.b32.xlu0 %v98, 104
  %v100 = vpop.permute.xlu0 %99
  %vm101 = vcmask 917312
  %102 = vst.msk [vmem:[%s1] sm:$0xff] %vm101, %v100
  %s103 = scalar_lea.vmem %s0, 141
  %v104 = vld [vmem:[%s103] sm:$0x1]
  %105 = vrot.lane.b32.xlu0 %v104, 104
  %v106 = vpop.permute.xlu0 %105
  %vm107 = vcmask 917312
  %s108 = scalar_lea.vmem %s1, 8
  %109 = vst.msk [vmem:[%s108] sm:$0x1] %vm107, %v106
  %s110 = scalar_lea.vmem %s0, 12
  %s111 = smov 3
  %v112 = vld [vmem:[%s110] ss:$16 sm:%s111]
  %s113 = scalar_lea.vmem %s0, 12
  %s114 = smov 12
  %v115 = vld [vmem:[%s113] ss:$16 sm:%s114]
  %vm116 = vcmask 1043458
  %v117 = vsel %vm116, %v115, %v112
  %s118 = scalar_lea.vmem %s0, 12
  %s119 = smov 48
  %v120 = vld [vmem:[%s118] ss:$16 sm:%s119]
  %vm121 = vcmask 1045508
  %v122 = vsel %vm121, %v120, %v117
  %s123 = scalar_lea.vmem %s0, 12
  %s124 = smov 192
  %v125 = vld [vmem:[%s123] ss:$16 sm:%s124]
  %vm126 = vcmask 1047558
  %v127 = vsel %vm126, %v125, %v122
  %128 = vrot.lane.b32.xlu0 %v127, 96
  %v129 = vpop.permute.xlu0 %128
  %vm130 = vcmask 851712
  %131 = vst.msk [vmem:[%s1] sm:$0xff] %vm130, %v129
  %s132 = scalar_lea.vmem %s0, 140
  %v133 = vld [vmem:[%s132] sm:$0x1]
  %134 = vrot.lane.b32.xlu0 %v133, 96
  %v135 = vpop.permute.xlu0 %134
  %vm136 = vcmask 851712
  %s137 = scalar_lea.vmem %s1, 8
  %138 = vst.msk [vmem:[%s137] sm:$0x1] %vm136, %v135
  %s139 = scalar_lea.vmem %s0, 11
  %s140 = smov 3
  %v141 = vld [vmem:[%s139] ss:$16 sm:%s140]
  %s142 = scalar_lea.vmem %s0, 11
  %s143 = smov 12
  %v144 = vld [vmem:[%s142] ss:$16 sm:%s143]
  %vm145 = vcmask 1043458
  %v146 = vsel %vm145, %v144, %v141
  %s147 = scalar_lea.vmem %s0, 11
  %s148 = smov 48
  %v149 = vld [vmem:[%s147] ss:$16 sm:%s148]
  %vm150 = vcmask 1045508
  %v151 = vsel %vm150, %v149, %v146
  %s152 = scalar_lea.vmem %s0, 11
  %s153 = smov 192
  %v154 = vld [vmem:[%s152] ss:$16 sm:%s153]
  %vm155 = vcmask 1047558
  %v156 = vsel %vm155, %v154, %v151
  %157 = vrot.lane.b32.xlu0 %v156, 88
  %v158 = vpop.permute.xlu0 %157
  %vm159 = vcmask 786112
  %160 = vst.msk [vmem:[%s1] sm:$0xff] %vm159, %v158
  %s161 = scalar_lea.vmem %s0, 139
  %v162 = vld [vmem:[%s161] sm:$0x1]
  %163 = vrot.lane.b32.xlu0 %v162, 88
  %v164 = vpop.permute.xlu0 %163
  %vm165 = vcmask 786112
  %s166 = scalar_lea.vmem %s1, 8
  %167 = vst.msk [vmem:[%s166] sm:$0x1] %vm165, %v164
  %s168 = scalar_lea.vmem %s0, 10
  %s169 = smov 3
  %v170 = vld [vmem:[%s168] ss:$16 sm:%s169]
  %s171 = scalar_lea.vmem %s0, 10
  %s172 = smov 12
  %v173 = vld [vmem:[%s171] ss:$16 sm:%s172]
  %vm174 = vcmask 1043458
  %v175 = vsel %vm174, %v173, %v170
  %s176 = scalar_lea.vmem %s0, 10
  %s177 = smov 48
  %v178 = vld [vmem:[%s176] ss:$16 sm:%s177]
  %vm179 = vcmask 1045508
  %v180 = vsel %vm179, %v178, %v175
  %s181 = scalar_lea.vmem %s0, 10
  %s182 = smov 192
  %v183 = vld [vmem:[%s181] ss:$16 sm:%s182]
  %vm184 = vcmask 1047558
  %v185 = vsel %vm184, %v183, %v180
  %186 = vrot.lane.b32.xlu0 %v185, 80
  %v187 = vpop.permute.xlu0 %186
  %vm188 = vcmask 720512
  %189 = vst.msk [vmem:[%s1] sm:$0xff] %vm188, %v187
  %s190 = scalar_lea.vmem %s0, 138
  %v191 = vld [vmem:[%s190] sm:$0x1]
  %192 = vrot.lane.b32.xlu0 %v191, 80
  %v193 = vpop.permute.xlu0 %192
  %vm194 = vcmask 720512
  %s195 = scalar_lea.vmem %s1, 8
  %196 = vst.msk [vmem:[%s195] sm:$0x1] %vm194, %v193
  %s197 = scalar_lea.vmem %s0, 9
  %s198 = smov 3
  %v199 = vld [vmem:[%s197] ss:$16 sm:%s198]
  %s200 = scalar_lea.vmem %s0, 9
  %s201 = smov 12
  %v202 = vld [vmem:[%s200] ss:$16 sm:%s201]
  %vm203 = vcmask 1043458
  %v204 = vsel %vm203, %v202, %v199
  %s205 = scalar_lea.vmem %s0, 9
  %s206 = smov 48
  %v207 = vld [vmem:[%s205] ss:$16 sm:%s206]
  %vm208 = vcmask 1045508
  %v209 = vsel %vm208, %v207, %v204
  %s210 = scalar_lea.vmem %s0, 9
  %s211 = smov 192
  %v212 = vld [vmem:[%s210] ss:$16 sm:%s211]
  %vm213 = vcmask 1047558
  %v214 = vsel %vm213, %v212, %v209
  %215 = vrot.lane.b32.xlu0 %v214, 72
  %v216 = vpop.permute.xlu0 %215
  %vm217 = vcmask 654912
  %218 = vst.msk [vmem:[%s1] sm:$0xff] %vm217, %v216
  %s219 = scalar_lea.vmem %s0, 137
  %v220 = vld [vmem:[%s219] sm:$0x1]
  %221 = vrot.lane.b32.xlu0 %v220, 72
  %v222 = vpop.permute.xlu0 %221
  %vm223 = vcmask 654912
  %s224 = scalar_lea.vmem %s1, 8
  %225 = vst.msk [vmem:[%s224] sm:$0x1] %vm223, %v222
  %s226 = scalar_lea.vmem %s0, 8
  %s227 = smov 3
  %v228 = vld [vmem:[%s226] ss:$16 sm:%s227]
  %s229 = scalar_lea.vmem %s0, 8
  %s230 = smov 12
  %v231 = vld [vmem:[%s229] ss:$16 sm:%s230]
  %vm232 = vcmask 1043458
  %v233 = vsel %vm232, %v231, %v228
  %s234 = scalar_lea.vmem %s0, 8
  %s235 = smov 48
  %v236 = vld [vmem:[%s234] ss:$16 sm:%s235]
  %vm237 = vcmask 1045508
  %v238 = vsel %vm237, %v236, %v233
  %s239 = scalar_lea.vmem %s0, 8
  %s240 = smov 192
  %v241 = vld [vmem:[%s239] ss:$16 sm:%s240]
  %vm242 = vcmask 1047558
  %v243 = vsel %vm242, %v241, %v238
  %244 = vrot.lane.b32.xlu0 %v243, 64
  %v245 = vpop.permute.xlu0 %244
  %vm246 = vcmask 589312
  %247 = vst.msk [vmem:[%s1] sm:$0xff] %vm246, %v245
  %s248 = scalar_lea.vmem %s0, 136
  %v249 = vld [vmem:[%s248] sm:$0x1]
  %250 = vrot.lane.b32.xlu0 %v249, 64
  %v251 = vpop.permute.xlu0 %250
  %vm252 = vcmask 589312
  %s253 = scalar_lea.vmem %s1, 8
  %254 = vst.msk [vmem:[%s253] sm:$0x1] %vm252, %v251
  %s255 = scalar_lea.vmem %s0, 7
  %s256 = smov 3
  %v257 = vld [vmem:[%s255] ss:$16 sm:%s256]
  %s258 = scalar_lea.vmem %s0, 7
  %s259 = smov 12
  %v260 = vld [vmem:[%s258] ss:$16 sm:%s259]
  %vm261 = vcmask 1043458
  %v262 = vsel %vm261, %v260, %v257
  %s263 = scalar_lea.vmem %s0, 7
  %s264 = smov 48
  %v265 = vld [vmem:[%s263] ss:$16 sm:%s264]
  %vm266 = vcmask 1045508
  %v267 = vsel %vm266, %v265, %v262
  %s268 = scalar_lea.vmem %s0, 7
  %s269 = smov 192
  %v270 = vld [vmem:[%s268] ss:$16 sm:%s269]
  %vm271 = vcmask 1047558
  %v272 = vsel %vm271, %v270, %v267
  %273 = vrot.lane.b32.xlu0 %v272, 56
  %v274 = vpop.permute.xlu0 %273
  %vm275 = vcmask 523712
  %276 = vst.msk [vmem:[%s1] sm:$0xff] %vm275, %v274
  %s277 = scalar_lea.vmem %s0, 135
  %v278 = vld [vmem:[%s277] sm:$0x1]
  %279 = vrot.lane.b32.xlu0 %v278, 56
  %v280 = vpop.permute.xlu0 %279
  %vm281 = vcmask 523712
  %s282 = scalar_lea.vmem %s1, 8
  %283 = vst.msk [vmem:[%s282] sm:$0x1] %vm281, %v280
  %s284 = scalar_lea.vmem %s0, 6
  %s285 = smov 3
  %v286 = vld [vmem:[%s284] ss:$16 sm:%s285]
  %s287 = scalar_lea.vmem %s0, 6
  %s288 = smov 12
  %v289 = vld [vmem:[%s287] ss:$16 sm:%s288]
  %vm290 = vcmask 1043458
  %v291 = vsel %vm290, %v289, %v286
  %s292 = scalar_lea.vmem %s0, 6
  %s293 = smov 48
  %v294 = vld [vmem:[%s292] ss:$16 sm:%s293]
  %vm295 = vcmask 1045508
  %v296 = vsel %vm295, %v294, %v291
  %s297 = scalar_lea.vmem %s0, 6
  %s298 = smov 192
  %v299 = vld [vmem:[%s297] ss:$16 sm:%s298]
  %vm300 = vcmask 1047558
  %v301 = vsel %vm300, %v299, %v296
  %302 = vrot.lane.b32.xlu0 %v301, 48
  %v303 = vpop.permute.xlu0 %302
  %vm304 = vcmask 458112
  %305 = vst.msk [vmem:[%s1] sm:$0xff] %vm304, %v303
  %s306 = scalar_lea.vmem %s0, 134
  %v307 = vld [vmem:[%s306] sm:$0x1]
  %308 = vrot.lane.b32.xlu0 %v307, 48
  %v309 = vpop.permute.xlu0 %308
  %vm310 = vcmask 458112
  %s311 = scalar_lea.vmem %s1, 8
  %312 = vst.msk [vmem:[%s311] sm:$0x1] %vm310, %v309
  %s313 = scalar_lea.vmem %s0, 5
  %s314 = smov 3
  %v315 = vld [vmem:[%s313] ss:$16 sm:%s314]
  %s316 = scalar_lea.vmem %s0, 5
  %s317 = smov 12
  %v318 = vld [vmem:[%s316] ss:$16 sm:%s317]
  %vm319 = vcmask 1043458
  %v320 = vsel %vm319, %v318, %v315
  %s321 = scalar_lea.vmem %s0, 5
  %s322 = smov 48
  %v323 = vld [vmem:[%s321] ss:$16 sm:%s322]
  %vm324 = vcmask 1045508
  %v325 = vsel %vm324, %v323, %v320
  %s326 = scalar_lea.vmem %s0, 5
  %s327 = smov 192
  %v328 = vld [vmem:[%s326] ss:$16 sm:%s327]
  %vm329 = vcmask 1047558
  %v330 = vsel %vm329, %v328, %v325
  %331 = vrot.lane.b32.xlu0 %v330, 40
  %v332 = vpop.permute.xlu0 %331
  %vm333 = vcmask 392512
  %334 = vst.msk [vmem:[%s1] sm:$0xff] %vm333, %v332
  %s335 = scalar_lea.vmem %s0, 133
  %v336 = vld [vmem:[%s335] sm:$0x1]
  %337 = vrot.lane.b32.xlu0 %v336, 40
  %v338 = vpop.permute.xlu0 %337
  %vm339 = vcmask 392512
  %s340 = scalar_lea.vmem %s1, 8
  %341 = vst.msk [vmem:[%s340] sm:$0x1] %vm339, %v338
  %s342 = scalar_lea.vmem %s0, 4
  %s343 = smov 3
  %v344 = vld [vmem:[%s342] ss:$16 sm:%s343]
  %s345 = scalar_lea.vmem %s0, 4
  %s346 = smov 12
  %v347 = vld [vmem:[%s345] ss:$16 sm:%s346]
  %vm348 = vcmask 1043458
  %v349 = vsel %vm348, %v347, %v344
  %s350 = scalar_lea.vmem %s0, 4
  %s351 = smov 48
  %v352 = vld [vmem:[%s350] ss:$16 sm:%s351]
  %vm353 = vcmask 1045508
  %v354 = vsel %vm353, %v352, %v349
  %s355 = scalar_lea.vmem %s0, 4
  %s356 = smov 192
  %v357 = vld [vmem:[%s355] ss:$16 sm:%s356]
  %vm358 = vcmask 1047558
  %v359 = vsel %vm358, %v357, %v354
  %360 = vrot.lane.b32.xlu0 %v359, 32
  %v361 = vpop.permute.xlu0 %360
  %vm362 = vcmask 326912
  %363 = vst.msk [vmem:[%s1] sm:$0xff] %vm362, %v361
  %s364 = scalar_lea.vmem %s0, 132
  %v365 = vld [vmem:[%s364] sm:$0x1]
  %366 = vrot.lane.b32.xlu0 %v365, 32
  %v367 = vpop.permute.xlu0 %366
  %vm368 = vcmask 326912
  %s369 = scalar_lea.vmem %s1, 8
  %370 = vst.msk [vmem:[%s369] sm:$0x1] %vm368, %v367
  %s371 = scalar_lea.vmem %s0, 3
  %s372 = smov 3
  %v373 = vld [vmem:[%s371] ss:$16 sm:%s372]
  %s374 = scalar_lea.vmem %s0, 3
  %s375 = smov 12
  %v376 = vld [vmem:[%s374] ss:$16 sm:%s375]
  %vm377 = vcmask 1043458
  %v378 = vsel %vm377, %v376, %v373
  %s379 = scalar_lea.vmem %s0, 3
  %s380 = smov 48
  %v381 = vld [vmem:[%s379] ss:$16 sm:%s380]
  %vm382 = vcmask 1045508
  %v383 = vsel %vm382, %v381, %v378
  %s384 = scalar_lea.vmem %s0, 3
  %s385 = smov 192
  %v386 = vld [vmem:[%s384] ss:$16 sm:%s385]
  %vm387 = vcmask 1047558
  %v388 = vsel %vm387, %v386, %v383
  %389 = vrot.lane.b32.xlu0 %v388, 24
  %v390 = vpop.permute.xlu0 %389
  %vm391 = vcmask 261312
  %392 = vst.msk [vmem:[%s1] sm:$0xff] %vm391, %v390
  %s393 = scalar_lea.vmem %s0, 131
  %v394 = vld [vmem:[%s393] sm:$0x1]
  %395 = vrot.lane.b32.xlu0 %v394, 24
  %v396 = vpop.permute.xlu0 %395
  %vm397 = vcmask 261312
  %s398 = scalar_lea.vmem %s1, 8
  %399 = vst.msk [vmem:[%s398] sm:$0x1] %vm397, %v396
  %s400 = scalar_lea.vmem %s0, 2
  %s401 = smov 3
  %v402 = vld [vmem:[%s400] ss:$16 sm:%s401]
  %s403 = scalar_lea.vmem %s0, 2
  %s404 = smov 12
  %v405 = vld [vmem:[%s403] ss:$16 sm:%s404]
  %vm406 = vcmask 1043458
  %v407 = vsel %vm406, %v405, %v402
  %s408 = scalar_lea.vmem %s0, 2
  %s409 = smov 48
  %v410 = vld [vmem:[%s408] ss:$16 sm:%s409]
  %vm411 = vcmask 1045508
  %v412 = vsel %vm411, %v410, %v407
  %s413 = scalar_lea.vmem %s0, 2
  %s414 = smov 192
  %v415 = vld [vmem:[%s413] ss:$16 sm:%s414]
  %vm416 = vcmask 1047558
  %v417 = vsel %vm416, %v415, %v412
  %418 = vrot.lane.b32.xlu0 %v417, 16
  %v419 = vpop.permute.xlu0 %418
  %vm420 = vcmask 195712
  %421 = vst.msk [vmem:[%s1] sm:$0xff] %vm420, %v419
  %s422 = scalar_lea.vmem %s0, 130
  %v423 = vld [vmem:[%s422] sm:$0x1]
  %424 = vrot.lane.b32.xlu0 %v423, 16
  %v425 = vpop.permute.xlu0 %424
  %vm426 = vcmask 195712
  %s427 = scalar_lea.vmem %s1, 8
  %428 = vst.msk [vmem:[%s427] sm:$0x1] %vm426, %v425
  %s429 = scalar_lea.vmem %s0, 1
  %s430 = smov 3
  %v431 = vld [vmem:[%s429] ss:$16 sm:%s430]
  %s432 = scalar_lea.vmem %s0, 1
  %s433 = smov 12
  %v434 = vld [vmem:[%s432] ss:$16 sm:%s433]
  %vm435 = vcmask 1043458
  %v436 = vsel %vm435, %v434, %v431
  %s437 = scalar_lea.vmem %s0, 1
  %s438 = smov 48
  %v439 = vld [vmem:[%s437] ss:$16 sm:%s438]
  %vm440 = vcmask 1045508
  %v441 = vsel %vm440, %v439, %v436
  %s442 = scalar_lea.vmem %s0, 1
  %s443 = smov 192
  %v444 = vld [vmem:[%s442] ss:$16 sm:%s443]
  %vm445 = vcmask 1047558
  %v446 = vsel %vm445, %v444, %v441
  %447 = vrot.lane.b32.xlu0 %v446, 8
  %v448 = vpop.permute.xlu0 %447
  %vm449 = vcmask 130112
  %450 = vst.msk [vmem:[%s1] sm:$0xff] %vm449, %v448
  %s451 = scalar_lea.vmem %s0, 129
  %v452 = vld [vmem:[%s451] sm:$0x1]
  %453 = vrot.lane.b32.xlu0 %v452, 8
  %v454 = vpop.permute.xlu0 %453
  %vm455 = vcmask 130112
  %s456 = scalar_lea.vmem %s1, 8
  %457 = vst.msk [vmem:[%s456] sm:$0x1] %vm455, %v454

// kernel: conv_sep_block.1
$region0: #{conv_sep_block.1}
  #allocation0 [shape = 'u32[]', space=smem, size = 0x4, offset = 0x4, fixed_abs, tag = 'smem constant byte address 0x4 - core index']
  #allocation1 [shape = 'u32[144,128]{1,0:T(1,128)}', space=vmem, size = 0x12000, scoped, tag = 'internal scratch']
  #allocation2 [shape = 'f32[36,128]{1,0:T(8,128)}', space=vmem, size = 0x5000, scoped, tag = 'scratch operand']
  %s0 = inlined_call_operand.vmem [shape: f32[32,64], index: 0, kind: input, shape index: {}]
  %s1 = inlined_call_operand.vmem [shape: f32[64,128], index: 1, kind: input, shape index: {}]
  %s2 = inlined_call_operand.vmem [shape: f32[1,128], index: 2, kind: input, shape index: {}]
  %s3 = inlined_call_operand.vmem [shape: f32[9,128], index: 3, kind: input, shape index: {}]
  %s4 = inlined_call_operand.vmem [shape: f32[1,128], index: 4, kind: input, shape index: {}]
  %s5 = inlined_call_operand.vmem [shape: f32[32,128], index: 5, kind: output, shape index: {0}]
  %s6 = inlined_call_operand.vmem [shape: f32[32,128], index: 6, kind: output, shape index: {1}]
  %7 = xla_tuple %s5, %s6
  %s8 = sld [smem:[#allocation0]]
  $region38: #{conv_sep_block.1} parent=0
    _
  %s10 = ssub.s32 1, %s8
  %s11 = scalar_select 0, %s10, %s8
  // Predicated region
  $region2: #{conv_sep_block.1} parent=0 // pred_check
    _
  $region3: #{conv_sep_block.1} parent=0 // pred_check_branch
    %13 = sbr.rel (0) target = $region5
  $region4: #{conv_sep_block.1} parent=0 // pred_region
    _
  $region5: #{conv_sep_block.1} parent=0 // pred_fallthru
    _
  // Predicated region
  $region6: #{conv_sep_block.1} parent=0 // pred_check
    _
  $region7: #{conv_sep_block.1} parent=0 // pred_check_branch
    %15 = sbr.rel (0) target = $region9
  $region8: #{conv_sep_block.1} parent=0 // pred_region
    _
  $region9: #{conv_sep_block.1} parent=0 // pred_fallthru
    _
  // Predicated region
  $region10: #{conv_sep_block.1} parent=0 // pred_check
    _
  $region11: #{conv_sep_block.1} parent=0 // pred_check_branch
    %17 = sbr.rel (0) target = $region13
  $region12: #{conv_sep_block.1} parent=0 // pred_region
    _
  $region13: #{conv_sep_block.1} parent=0 // pred_fallthru
    _
  // Predicated region
  $region14: #{conv_sep_block.1} parent=0 // pred_check
    _
  $region15: #{conv_sep_block.1} parent=0 // pred_check_branch
    %19 = sbr.rel (0) target = $region17
  $region16: #{conv_sep_block.1} parent=0 // pred_region
    _
  $region17: #{conv_sep_block.1} parent=0 // pred_fallthru
    _
  // Predicated region
  $region18: #{conv_sep_block.1} parent=0 // pred_check
    _
  $region19: #{conv_sep_block.1} parent=0 // pred_check_branch
    %21 = sbr.rel (0) target = $region21
  $region20: #{conv_sep_block.1} parent=0 // pred_region
    _
  $region21: #{conv_sep_block.1} parent=0 // pred_fallthru
    _
  %v22 = vld [vmem:[%s0] sm:$0xff]
  %v23 = vld [vmem:[%s0 + $0x8] sm:$0xff]
  %v24 = vld [vmem:[%s0 + $0x10] sm:$0xff]
  %v25 = vld [vmem:[%s0 + $0x18] sm:$0xff]
  %v26 = vld [vmem:[%s1] sm:$0xff]
  %v27 = vld [vmem:[%s1 + $0x8] sm:$0xff]
  %v28 = vld [vmem:[%s1 + $0x10] sm:$0xff]
  %v29 = vld [vmem:[%s1 + $0x18] sm:$0xff]
  %v30 = vld [vmem:[%s1 + $0x20] sm:$0xff]
  %v31 = vld [vmem:[%s1 + $0x28] sm:$0xff]
  %v32 = vld [vmem:[%s1 + $0x30] sm:$0xff]
  %v33 = vld [vmem:[%s1 + $0x38] sm:$0xff]
  %v34 = vld [vmem:[%s2] sm:$0x1]
  %v36 = vlaneseq
  %v37 = vshrl.u32 %v36, 7
  %v38 = vsub.s32 0, %v37
  %v39 = vrot.slane %v34, %v38
  %vm41 = vcmask 523264
  %v43 = vsel %vm41, %v22, 0
  %v46 = vsel %vm41, %v23, 0
  %v49 = vsel %vm41, %v24, 0
  %v52 = vsel %vm41, %v25, 0
  %54 = vmatprep.subr.mxu0 0.0
  %55 = vmatpush1.msra.mxu0 %v26
  %56 = vmatprep.subr.mxu0 0.0
  %57 = vmatpush1.msra.mxu0 %v27
  %58 = vmatprep.subr.mxu0 0.0
  %59 = vmatpush1.msra.mxu0 %v28
  %60 = vmatprep.subr.mxu0 0.0
  %61 = vmatpush1.msra.mxu0 %v29
  %62 = vmatprep.subr.mxu0 0.0
  %63 = vmatpush1.msra.mxu0 %v30
  %64 = vmatprep.subr.mxu0 0.0
  %65 = vmatpush1.msra.mxu0 %v31
  %66 = vmatprep.subr.mxu0 0.0
  %67 = vmatpush1.msra.mxu0 %v32
  %68 = vmatprep.subr.mxu0 0.0
  %69 = vmatpush1.msra.mxu0 %v33
  %70 = vmatprep.subr.mxu0 0.0
  %71 = vmatpush1.msra.mxu0 0.0
  %72 = vmatprep.subr.mxu0 0.0
  %73 = vmatpush1.msra.mxu0 0.0
  %74 = vmatprep.subr.mxu0 0.0
  %75 = vmatpush1.msra.mxu0 0.0
  %76 = vmatprep.subr.mxu0 0.0
  %77 = vmatpush1.msra.mxu0 0.0
  %78 = vmatprep.subr.mxu0 0.0
  %79 = vmatpush1.msra.mxu0 0.0
  %80 = vmatprep.subr.mxu0 0.0
  %81 = vmatpush1.msra.mxu0 0.0
  %82 = vmatprep.subr.mxu0 0.0
  %83 = vmatpush1.msra.mxu0 0.0
  %84 = vmatprep.subr.mxu0 0.0
  %85 = vmatpush1.msra.mxu0 0.0
  %86 = vmatprep.subr.mxu0 0.0
  %87 = vmatpush1.msra.mxu0 0.0
  %88 = vmatprep.subr.mxu0 0.0
  %89 = vmatpush1.msra.mxu0 0.0
  %90 = vmatprep.subr.mxu0 0.0
  %91 = vmatpush1.msra.mxu0 0.0
  %92 = vmatprep.subr.mxu0 0.0
  %93 = vmatpush1.msra.mxu0 0.0
  %94 = vmatprep.subr.mxu0 0.0
  %95 = vmatpush1.msra.mxu0 0.0
  %96 = vmatprep.subr.mxu0 0.0
  %97 = vmatpush1.msra.mxu0 0.0
  %98 = vmatprep.subr.mxu0 0.0
  %99 = vmatpush1.msra.mxu0 0.0
  %100 = vmatprep.subr.mxu0 0.0
  %101 = vmatpush1.msra.mxu0 0.0
  %102 = vmatprep.subr.mxu0 0.0
  %103 = vmatpush1.msra.mxu0 0.0
  %104 = vmatprep.subr.mxu0 0.0
  %105 = vmatpush1.msra.mxu0 0.0
  %106 = vmatprep.subr.mxu0 0.0
  %107 = vmatpush1.msra.mxu0 0.0
  %108 = vmatprep.subr.mxu0 0.0
  %109 = vmatpush1.msra.mxu0 0.0
  %110 = vmatprep.subr.mxu0 0.0
  %111 = vmatpush1.msra.mxu0 0.0
  %112 = vmatprep.subr.mxu0 0.0
  %113 = vmatpush1.msra.mxu0 0.0
  %114 = vmatprep.subr.mxu0 0.0
  %115 = vmatpush1.msra.mxu0 0.0
  %116 = vmatprep.subr.mxu0 0.0
  %117 = vmatpush1.msra.mxu0 0.0
  %118 = vmatprep.mubr.f32.mxu0 0.0
  %119 = vmatmul.mubr.f32.gmra.mrb[0].mxu0 %v43
  %v120 = vpop.f32.mrb[0].mxu0
  %v121 = vadd.f32 %v39, %v120
  %v122 = vpop.f32.mrb[0].mxu0
  %123 = vmatprep.mubr.f32.mxu0 0.0
  %124 = vmatmul.mubr.f32.gmra.mrb[0].mxu0 %v46
  %v125 = vpop.f32.mrb[0].mxu0
  %v126 = vadd.f32 %v39, %v125
  %v127 = vpop.f32.mrb[0].mxu0
  %128 = vmatprep.mubr.f32.mxu0 0.0
  %129 = vmatmul.mubr.f32.gmra.mrb[0].mxu0 %v49
  %v130 = vpop.f32.mrb[0].mxu0
  %v131 = vadd.f32 %v39, %v130
  %v132 = vpop.f32.mrb[0].mxu0
  %133 = vmatprep.mubr.f32.mxu0 0.0
  %134 = vmatmul.mubr.f32.gmra.mrb[0].mxu0 %v52
  %v135 = vpop.f32.mrb[0].mxu0
  %v136 = vadd.f32 %v39, %v135
  %v137 = vpop.f32.mrb[0].mxu0
  %138 = vdwg.mxu0
  %v139 = vmax.f32 %v121, 0.0
  %v140 = vmax.f32 %v126, 0.0
  %v141 = vmax.f32 %v131, 0.0
  %v142 = vmax.f32 %v136, 0.0
  %143 = vst [vmem:[%s6] sm:$0xff] %v139
  %144 = vst [vmem:[%s6 + $0x8] sm:$0xff] %v140
  %145 = vst [vmem:[%s6 + $0x10] sm:$0xff] %v141
  %146 = vst [vmem:[%s6 + $0x18] sm:$0xff] %v142
  %v147 = vlaneseq
  %v148 = vand.u32 %v147, 127
  %vm149 = vcmp.ge.s32.totalorder %v148, 8
  %vm150 = vcmp.lt.s32.totalorder %v148, 120
  %v151 = vld [vmem:[%s3] sm:$0xff]
  %v152 = vld [vmem:[%s3 + $0x8] sm:$0x1]
  %v153 = vld [vmem:[%s4] sm:$0x1]
  %154 = vst [vmem:[#allocation2] sm:$0x1] 0.0
  %155 = vst [vmem:[#allocation2 + $0x1] sm:$0xff] %v139
  %156 = vst [vmem:[#allocation2 + $0x9] sm:$0xff] %v140
  %157 = vst [vmem:[#allocation2 + $0x11] sm:$0x1] 0.0
  %v158 = vld [vmem:[#allocation2] sm:$0xff]
  %v159 = vld [vmem:[#allocation2 + $0x8] sm:$0xff]
  %160 = vrot.lane.b32.xlu0 %v158, 8
  %v161 = vpop.permute.xlu0 %160
  %162 = vrot.lane.b32.xlu0 %v159, 8
  %v163 = vpop.permute.xlu0 %162
  %v164 = vsel %vm149, %v161, 0.0
  %v165 = vsel %vm149, %v163, 0.0
  %166 = vrot.lane.b32.xlu0 %v158, 120
  %v167 = vpop.permute.xlu0 %166
  %168 = vrot.lane.b32.xlu0 %v159, 120
  %v169 = vpop.permute.xlu0 %168
  %v170 = vsel %vm150, %v167, 0.0
  %v171 = vsel %vm150, %v169, 0.0
  %v172 = vlaneseq
  %v173 = vshrl.u32 %v172, 7
  %v174 = vsub.s32 0, %v173
  %v175 = vrot.slane %v151, %v174
  %v176 = vmul.f32 %v164, %v175
  %v177 = vmul.f32 %v165, %v175
  %v178 = vlaneseq
  %v179 = vshrl.u32 %v178, 7
  %v180 = vsub.s32 1, %v179
  %v181 = vrot.slane %v151, %v180
  %v182 = vmul.f32 %v158, %v181
  %v183 = vmul.f32 %v159, %v181
  %v184 = vadd.f32 %v176, %v182
  %v185 = vadd.f32 %v177, %v183
  %v186 = vlaneseq
  %v187 = vshrl.u32 %v186, 7
  %v188 = vsub.s32 2, %v187
  %v189 = vrot.slane %v151, %v188
  %v190 = vmul.f32 %v170, %v189
  %v191 = vmul.f32 %v171, %v189
  %v192 = vadd.f32 %v184, %v190
  %v193 = vadd.f32 %v185, %v191
  %v194 = vld [vmem:[#allocation2 + $0x1] sm:$0xff]
  %v195 = vld [vmem:[#allocation2 + $0x9] sm:$0xff]
  %196 = vrot.lane.b32.xlu0 %v194, 8
  %v197 = vpop.permute.xlu0 %196
  %198 = vrot.lane.b32.xlu0 %v195, 8
  %v199 = vpop.permute.xlu0 %198
  %v200 = vsel %vm149, %v197, 0.0
  %v201 = vsel %vm149, %v199, 0.0
  %202 = vrot.lane.b32.xlu0 %v194, 120
  %v203 = vpop.permute.xlu0 %202
  %204 = vrot.lane.b32.xlu0 %v195, 120
  %v205 = vpop.permute.xlu0 %204
  %v206 = vsel %vm150, %v203, 0.0
  %v207 = vsel %vm150, %v205, 0.0
  %v208 = vlaneseq
  %v209 = vshrl.u32 %v208, 7
  %v210 = vsub.s32 3, %v209
  %v211 = vrot.slane %v151, %v210
  %v212 = vmul.f32 %v200, %v211
  %v213 = vmul.f32 %v201, %v211
  %v214 = vadd.f32 %v192, %v212
  %v215 = vadd.f32 %v193, %v213
  %v216 = vlaneseq
  %v217 = vshrl.u32 %v216, 7
  %v218 = vsub.s32 4, %v217
  %v219 = vrot.slane %v151, %v218
  %v220 = vmul.f32 %v194, %v219
  %v221 = vmul.f32 %v195, %v219
  %v222 = vadd.f32 %v214, %v220
  %v223 = vadd.f32 %v215, %v221
  %v224 = vlaneseq
  %v225 = vshrl.u32 %v224, 7
  %v226 = vsub.s32 5, %v225
  %v227 = vrot.slane %v151, %v226
  %v228 = vmul.f32 %v206, %v227
  %v229 = vmul.f32 %v207, %v227
  %v230 = vadd.f32 %v222, %v228
  %v231 = vadd.f32 %v223, %v229
  %v232 = vld [vmem:[#allocation2 + $0x2] sm:$0xff]
  %v233 = vld [vmem:[#allocation2 + $0xa] sm:$0xff]
  %234 = vrot.lane.b32.xlu0 %v232, 8
  %v235 = vpop.permute.xlu0 %234
  %236 = vrot.lane.b32.xlu0 %v233, 8
  %v237 = vpop.permute.xlu0 %236
  %v238 = vsel %vm149, %v235, 0.0
  %v239 = vsel %vm149, %v237, 0.0
  %240 = vrot.lane.b32.xlu0 %v232, 120
  %v241 = vpop.permute.xlu0 %240
  %242 = vrot.lane.b32.xlu0 %v233, 120
  %v243 = vpop.permute.xlu0 %242
  %v244 = vsel %vm150, %v241, 0.0
  %v245 = vsel %vm150, %v243, 0.0
  %v246 = vlaneseq
  %v247 = vshrl.u32 %v246, 7
  %v248 = vsub.s32 6, %v247
  %v249 = vrot.slane %v151, %v248
  %v250 = vmul.f32 %v238, %v249
  %v251 = vmul.f32 %v239, %v249
  %v252 = vadd.f32 %v230, %v250
  %v253 = vadd.f32 %v231, %v251
  %v254 = vlaneseq
  %v255 = vshrl.u32 %v254, 7
  %v256 = vsub.s32 7, %v255
  %v257 = vrot.slane %v151, %v256
  %v258 = vmul.f32 %v232, %v257
  %v259 = vmul.f32 %v233, %v257
  %v260 = vadd.f32 %v252, %v258
  %v261 = vadd.f32 %v253, %v259
  %v262 = vlaneseq
  %v263 = vshrl.u32 %v262, 7
  %v264 = vsub.s32 0, %v263
  %v265 = vrot.slane %v152, %v264
  %v266 = vmul.f32 %v244, %v265
  %v267 = vmul.f32 %v245, %v265
  %v268 = vadd.f32 %v260, %v266
  %v269 = vadd.f32 %v261, %v267
  %v271 = vlaneseq
  %v272 = vshrl.u32 %v271, 7
  %v273 = vsub.s32 0, %v272
  %v274 = vrot.slane %v153, %v273
  %v276 = vadd.f32 %v268, %v274
  %v277 = vadd.f32 %v269, %v274
  %v278 = vmax.f32 %v276, 0.0
  %v279 = vmax.f32 %v277, 0.0
  %280 = vst [vmem:[%s5] sm:$0xff] %v278
  %281 = vst [vmem:[%s5 + $0x8] sm:$0xff] %v279
  %282 = vst [vmem:[#allocation2 + $0x12] sm:$0x1] 0.0
  %283 = vst [vmem:[#allocation2 + $0x13] sm:$0xff] %v141
  %284 = vst [vmem:[#allocation2 + $0x1b] sm:$0xff] %v142
  %285 = vst [vmem:[#allocation2 + $0x23] sm:$0x1] 0.0
  %v286 = vld [vmem:[#allocation2 + $0x12] sm:$0xff]
  %v287 = vld [vmem:[#allocation2 + $0x1a] sm:$0xff]
  %288 = vrot.lane.b32.xlu0 %v286, 8
  %v289 = vpop.permute.xlu0 %288
  %290 = vrot.lane.b32.xlu0 %v287, 8
  %v291 = vpop.permute.xlu0 %290
  %v292 = vsel %vm149, %v289, 0.0
  %v293 = vsel %vm149, %v291, 0.0
  %294 = vrot.lane.b32.xlu0 %v286, 120
  %v295 = vpop.permute.xlu0 %294
  %296 = vrot.lane.b32.xlu0 %v287, 120
  %v297 = vpop.permute.xlu0 %296
  %v298 = vsel %vm150, %v295, 0.0
  %v299 = vsel %vm150, %v297, 0.0
  %v300 = vmul.f32 %v292, %v175
  %v301 = vmul.f32 %v293, %v175
  %v302 = vmul.f32 %v286, %v181
  %v303 = vmul.f32 %v287, %v181
  %v304 = vadd.f32 %v300, %v302
  %v305 = vadd.f32 %v301, %v303
  %v306 = vmul.f32 %v298, %v189
  %v307 = vmul.f32 %v299, %v189
  %v308 = vadd.f32 %v304, %v306
  %v309 = vadd.f32 %v305, %v307
  %v310 = vld [vmem:[#allocation2 + $0x13] sm:$0xff]
  %v311 = vld [vmem:[#allocation2 + $0x1b] sm:$0xff]
  %312 = vrot.lane.b32.xlu0 %v310, 8
  %v313 = vpop.permute.xlu0 %312
  %314 = vrot.lane.b32.xlu0 %v311, 8
  %v315 = vpop.permute.xlu0 %314
  %v316 = vsel %vm149, %v313, 0.0
  %v317 = vsel %vm149, %v315, 0.0
  %318 = vrot.lane.b32.xlu0 %v310, 120
  %v319 = vpop.permute.xlu0 %318
  %320 = vrot.lane.b32.xlu0 %v311, 120
  %v321 = vpop.permute.xlu0 %320
  %v322 = vsel %vm150, %v319, 0.0
  %v323 = vsel %vm150, %v321, 0.0
  %v324 = vmul.f32 %v316, %v211
  %v325 = vmul.f32 %v317, %v211
  %v326 = vadd.f32 %v308, %v324
  %v327 = vadd.f32 %v309, %v325
  %v328 = vmul.f32 %v310, %v219
  %v329 = vmul.f32 %v311, %v219
  %v330 = vadd.f32 %v326, %v328
  %v331 = vadd.f32 %v327, %v329
  %v332 = vmul.f32 %v322, %v227
  %v333 = vmul.f32 %v323, %v227
  %v334 = vadd.f32 %v330, %v332
  %v335 = vadd.f32 %v331, %v333
  %v336 = vld [vmem:[#allocation2 + $0x14] sm:$0xff]
  %v337 = vld [vmem:[#allocation2 + $0x1c] sm:$0xff]
  %338 = vrot.lane.b32.xlu0 %v336, 8
  %v339 = vpop.permute.xlu0 %338
  %340 = vrot.lane.b32.xlu0 %v337, 8
  %v341 = vpop.permute.xlu0 %340
  %v342 = vsel %vm149, %v339, 0.0
  %v343 = vsel %vm149, %v341, 0.0
  %344 = vrot.lane.b32.xlu0 %v336, 120
  %v345 = vpop.permute.xlu0 %344
  %346 = vrot.lane.b32.xlu0 %v337, 120
  %v347 = vpop.permute.xlu0 %346
  %v348 = vsel %vm150, %v345, 0.0
  %v349 = vsel %vm150, %v347, 0.0
  %v350 = vmul.f32 %v342, %v249
  %v351 = vmul.f32 %v343, %v249
  %v352 = vadd.f32 %v334, %v350
  %v353 = vadd.f32 %v335, %v351
  %v354 = vmul.f32 %v336, %v257
  %v355 = vmul.f32 %v337, %v257
  %v356 = vadd.f32 %v352, %v354
  %v357 = vadd.f32 %v353, %v355
  %v358 = vmul.f32 %v348, %v265
  %v359 = vmul.f32 %v349, %v265
  %v360 = vadd.f32 %v356, %v358
  %v361 = vadd.f32 %v357, %v359
  %v362 = vadd.f32 %v360, %v274
  %v363 = vadd.f32 %v361, %v274
  %v364 = vmax.f32 %v362, 0.0
  %v365 = vmax.f32 %v363, 0.0
  %366 = vst [vmem:[%s5 + $0x10] sm:$0xff] %v364
  %367 = vst [vmem:[%s5 + $0x18] sm:$0xff] %v365
  // Predicated region
  $region22: #{conv_sep_block.1} parent=0 // pred_check
    _
  $region23: #{conv_sep_block.1} parent=0 // pred_check_branch
    %369 = sbr.rel (0) target = $region25
  $region24: #{conv_sep_block.1} parent=0 // pred_region
    _
  $region25: #{conv_sep_block.1} parent=0 // pred_fallthru
    _
  // Predicated region
  $region26: #{conv_sep_block.1} parent=0 // pred_check
    _
  $region27: #{conv_sep_block.1} parent=0 // pred_check_branch
    %371 = sbr.rel (0) target = $region29
  $region28: #{conv_sep_block.1} parent=0 // pred_region
    _
  $region29: #{conv_sep_block.1} parent=0 // pred_fallthru
    _
  // Predicated region
  $region30: #{conv_sep_block.1} parent=0 // pred_check
    _
  $region31: #{conv_sep_block.1} parent=0 // pred_check_branch
    %373 = sbr.rel (0) target = $region33
  $region32: #{conv_sep_block.1} parent=0 // pred_region
    _
  $region33: #{conv_sep_block.1} parent=0 // pred_fallthru
    _
  // Predicated region
  $region34: #{conv_sep_block.1} parent=0 // pred_check
    _
  $region35: #{conv_sep_block.1} parent=0 // pred_check_branch
    %375 = sbr.rel (0) target = $region37
  $region36: #{conv_sep_block.1} parent=0 // pred_region
    _
  $region37: #{conv_sep_block.1} parent=0 // pred_fallthru
    _

</llo_original>
